<compile_context>
chip_gen: v6e
topology: v6e:2x2x1
jax: 0.10.0
libtpu: 0.0.40
codegen_flags: <defaults>
</compile_context>

<pallas_src>
import functools

import jax
import jax.numpy as jnp
from jax.experimental import pallas as pl
from jax.experimental.pallas import tpu as pltpu


def _round_up(x, m):
    return ((x + m - 1) // m) * m


def _vmem_capacity_bytes():
    """Best-effort physical VMEM query; conservative (v7x per-TC) fallback."""
    try:
        cap = int(pltpu.get_tpu_info().vmem_capacity_bytes)
        if cap > 0:
            return cap
    except Exception:
        pass
    return 64 << 20


# ------------------------------ kernels -------------------------------------

def _dense_kernel_acc(x_ref, w_ref, b_ref, o_ref, acc_ref, *, activation):
    # x_ref  : (tm, tk)  activation tile (bf16 or f32, pre-cast in wrapper)
    # w_ref  : (tk, tn)  weight tile, pre-transposed to (K, N) layout at init
    # b_ref  : (1,  tn)  f32 bias slice
    # o_ref  : (tm, tn)  output tile
    # acc_ref: (tm, tn)  f32 accumulator, resident across the K grid axis
    k = pl.program_id(2)

    @pl.when(k == 0)
    def _():
        acc_ref[...] = jnp.zeros_like(acc_ref)

    acc_ref[...] += jnp.dot(x_ref[...], w_ref[...],
                            preferred_element_type=jnp.float32)

    @pl.when(k == pl.num_programs(2) - 1)
    def _():
        out = acc_ref[...] + b_ref[...]
        if activation:
            out = jnp.maximum(out, 0.0)
        o_ref[...] = out.astype(o_ref.dtype)


def _dense_kernel_single_k(x_ref, w_ref, b_ref, o_ref, *, activation):
    # Whole K fits in one tile: write dot+bias(+ReLU) straight to o_ref and
    # skip the accumulator zero-init + f32 VMEM read-modify-write.
    out = jnp.dot(x_ref[...], w_ref[...], preferred_element_type=jnp.float32)
    out = out + b_ref[...]
    if activation:
        out = jnp.maximum(out, 0.0)
    o_ref[...] = out.astype(o_ref.dtype)


# ------------------------------ module --------------------------------------

class DenseRelu:
    """Pallas-TPU equivalent of the PyTorch dense_relu module.

    Construction does the one-time parameter prep (bf16 cast, zero-pad to tile
    multiples, transpose to (K, N)); __call__ only pads/casts x and launches
    the kernel.
    """

    def __init__(self, weight, bias, activation=False, *,
                 use_bf16=True, tm=None, tn=None, tk=None):
        N, K = weight.shape
        assert bias.shape == (N,)
        self.activation = bool(activation)
        self.use_bf16 = bool(use_bf16) and weight.dtype == jnp.float32
        self.N, self.K = N, K

        self._vmem_cap = _vmem_capacity_bytes()
        big_vmem = self._vmem_cap >= (100 << 20)        # v5e / v6e (128 MiB)

        # Generation-aware defaults: bf16 streams + big output tiles keep the
        # per-K-step arithmetic intensity above the HBM ridge point.
        #   v5e/v6e (128 MiB VMEM): 1536x1536 output tiles
        #   v7x / unknown (64 MiB): 1024x1024 output tiles (ridge ~310 FLOP/B)
        if tm is None:
            tm = 1536 if big_vmem else 1024
        if tn is None:
            tn = 1536 if big_vmem else 1024
        if tk is None:
            tk = 2048                                    # fat K steps (bf16)

        # Clamp to hardware-rounded extents (lane-dense tn, lane-granular tk).
        self._tm_max = tm
        tn = min(tn, _round_up(N, 128))
        tk = min(tk, _round_up(K, 128))
        self.tn, self.tk = tn, tk

        Np, Kp = _round_up(N, tn), _round_up(K, tk)
        self.Np, self.Kp = Np, Kp

        # One-time weight prep (NOT in the per-call hot path):
        #   cast -> pad -> transpose to (Kp, Np) so the kernel is a plain
        #   (tm,tk)x(tk,tn) MXU matmul with no per-tile transpose.
        w_dtype = jnp.bfloat16 if self.use_bf16 else weight.dtype
        w = weight.astype(w_dtype)
        if (Np, Kp) != (N, K):
            w = jnp.pad(w, ((0, Np - N), (0, Kp - K)))
        self.w_kn = jnp.asarray(w.T)

        b = bias.astype(jnp.float32)
        if Np != N:
            b = jnp.pad(b, (0, Np - N))
        self.bias2d = b.reshape(1, Np)

    def __call__(self, x):
        M, K = x.shape
        assert K == self.K
        out_dtype = x.dtype
        N, Np, Kp = self.N, self.Np, self.Kp
        tn, tk = self.tn, self.tk

        # bf16 packs 16 rows per sublane group; keep tm a multiple of 16.
        row_gran = 16 if self.use_bf16 else 8
        tm = min(self._tm_max, _round_up(M, row_gran))
        Mp = _round_up(M, tm)

        gi, gj = Mp // tm, Np // tn
        # Give both v7x TensorCores work: if both parallel axes collapsed to a
        # single block, split N (no effect on single-TC v5e/v6e).
        if (gi == 1 and gj == 1 and tn >= 256
                and (tn // 2) % 128 == 0 and Np % (tn // 2) == 0):
            tn //= 2
            gj = Np // tn

        # Pre-cast activations to bf16 before the kernel -> halves HBM bytes
        # per tile versus streaming f32 and casting in-kernel.
        x_c = x.astype(jnp.bfloat16) if self.use_bf16 else x
        if (Mp, Kp) != (M, K):
            x_c = jnp.pad(x_c, ((0, Mp - M), (0, Kp - K)))

        gk = Kp // tk
        grid = (gi, gj, gk)
        single_k = gk == 1

        if single_k:
            kernel = functools.partial(_dense_kernel_single_k,
                                       activation=self.activation)
            scratch = []
            acc_bytes = 0
        else:
            kernel = functools.partial(_dense_kernel_acc,
                                       activation=self.activation)
            scratch = [pltpu.VMEM((tm, tn), jnp.float32)]
            acc_bytes = tm * tn * 4

        # VMEM budget: double-buffered in/out blocks + resident accumulator,
        # with generation-aware headroom (16 MiB) off the physical capacity.
        vmem_need = (2 * (tm * tk * x_c.dtype.itemsize
                          + tk * tn * self.w_kn.dtype.itemsize
                          + tn * 4
                          + tm * tn * out_dtype.itemsize)
                     + acc_bytes)
        vmem_limit = min(vmem_need + (8 << 20),
                         max(self._vmem_cap - (16 << 20), 32 << 20))

        out = pl.pallas_call(
            kernel,
            out_shape=jax.ShapeDtypeStruct((Mp, Np), out_dtype),
            grid_spec=pltpu.PrefetchScalarGridSpec(
                num_scalar_prefetch=0,
                grid=grid,
                in_specs=[
                    pl.BlockSpec((tm, tk), lambda i, j, k: (i, k)),  # x tile
                    pl.BlockSpec((tk, tn), lambda i, j, k: (k, j)),  # W (K,N)
                    pl.BlockSpec((1, tn), lambda i, j, k: (0, j)),   # bias
                ],
                out_specs=pl.BlockSpec((tm, tn), lambda i, j, k: (i, j)),
                scratch_shapes=scratch,
            ),
            compiler_params=pltpu.CompilerParams(
                dimension_semantics=("parallel", "parallel", "arbitrary"),
                vmem_limit_bytes=int(vmem_limit)),
        )(x_c, self.w_kn, self.bias2d)

        if (Mp, Np) != (M, N):
            out = out[:M, :N]
        return out


def dense_relu_forward(x, weight, bias, *, activation=False, use_bf16=True,
                       tm=None, tn=None, tk=None):
    """One-shot functional wrapper (param prep happens inside; prefer DenseRelu
    for repeated calls so weight pad/cast/transpose is done once)."""
    mod = DenseRelu(weight, bias, activation,
                    use_bf16=use_bf16, tm=tm, tn=tn, tk=tk)
    return mod(x)


if __name__ == "__main__":
    key = jax.random.PRNGKey(0)

    # ---- Test 1: small shapes matching the nn.Linear demo (with ReLU) ----
    batch, in_features, out_features = 8, 32, 16
    kx, kw, kb, key = jax.random.split(key, 4)
    x = jax.random.normal(kx, (batch, in_features), dtype=jnp.float32)
    bound = 1.0 / (in_features ** 0.5)
    weight = jax.random.uniform(kw, (out_features, in_features),
                                minval=-bound, maxval=bound, dtype=jnp.float32)
    bias = jax.random.uniform(kb, (out_features,),
                              minval=-bound, maxval=bound, dtype=jnp.float32)

    layer = DenseRelu(weight, bias, activation=True)
    y = jax.block_until_ready(layer(x))
    y_ref = jnp.maximum(x @ weight.T + bias, 0.0)
    assert y.shape == (batch, out_features)
    # bf16 MXU inputs with f32 accumulation -> loosened tolerance vs f32 ref.
    assert jnp.allclose(y, y_ref, atol=2e-2, rtol=2e-2)

    # ---- Test 2: non-multiple shapes exercising the full 3-D tiled grid ----
    M2, K2, N2 = 320, 1500, 260
    kx, kw, kb, key = jax.random.split(key, 4)
    x2 = jax.random.normal(kx, (M2, K2), dtype=jnp.float32)
    b2 = 1.0 / (K2 ** 0.5)
    w2 = jax.random.uniform(kw, (N2, K2), minval=-b2, maxval=b2,
                            dtype=jnp.float32)
    bb2 = jax.random.uniform(kb, (N2,), minval=-b2, maxval=b2,
                             dtype=jnp.float32)

    layer2 = DenseRelu(w2, bb2, activation=False,
                       tm=128, tn=128, tk=512)   # grid (3, 3, 3) with padding
    y2 = jax.block_until_ready(layer2(x2))
    y2_ref = x2 @ w2.T + bb2
    assert y2.shape == (M2, N2)
    assert jnp.allclose(y2, y2_ref, atol=2e-2, rtol=2e-2)

    print("KERNEL_OK")
</pallas_src>

<mosaic_0001>
module attributes {stable_mosaic.version = 11 : i64} {
  func.func @_dense_kernel_single_k(%arg0: i32, %arg1: i32, %arg2: i32, %arg3: memref<16x128xbf16, #tpu.memory_space<vmem>>, %arg4: memref<128x128xbf16, #tpu.memory_space<vmem>>, %arg5: memref<1x128xf32, #tpu.memory_space<vmem>>, %arg6: memref<16x128xf32, #tpu.memory_space<vmem>>) attributes {dimension_semantics = [#tpu.dimension_semantics<parallel>, #tpu.dimension_semantics<parallel>, #tpu.dimension_semantics<arbitrary>], iteration_bounds = array<i64: 1, 1, 1>, scalar_prefetch = 0 : i64, scratch_operands = 0 : i64, tpu.core_type = #tpu.core_type<tc>, window_params = [{transform_indices = @transform_0, window_bounds = array<i64: 16, 128>}, {transform_indices = @transform_1, window_bounds = array<i64: 128, 128>}, {transform_indices = @transform_2, window_bounds = array<i64: 1, 128>}, {transform_indices = @transform_3, window_bounds = array<i64: 16, 128>}]} {
    %c0 = arith.constant 0 : index
    %c0_0 = arith.constant 0 : index
    %0 = vector.load %arg3[%c0, %c0_0] : memref<16x128xbf16, #tpu.memory_space<vmem>>, vector<16x128xbf16>
    %c0_1 = arith.constant 0 : index
    %c0_2 = arith.constant 0 : index
    %1 = vector.load %arg4[%c0_1, %c0_2] : memref<128x128xbf16, #tpu.memory_space<vmem>>, vector<128x128xbf16>
    %cst = arith.constant dense<0.000000e+00> : vector<16x128xf32>
    %2 = tpu.matmul %0, %1, %cst {dimension_numbers = #tpu.dot_dimension_numbers<[1], [0], [0], [1], [0, 0, 1, 1], [], []>} : vector<16x128xbf16>, vector<128x128xbf16>, vector<16x128xf32> -> vector<16x128xf32>
    %c0_3 = arith.constant 0 : index
    %c0_4 = arith.constant 0 : index
    %3 = vector.load %arg5[%c0_3, %c0_4] : memref<1x128xf32, #tpu.memory_space<vmem>>, vector<1x128xf32>
    %4 = vector.broadcast %3 : vector<1x128xf32> to vector<16x128xf32>
    %5 = arith.addf %2, %4 : vector<16x128xf32>
    %cst_5 = arith.constant 0.000000e+00 : f32
    %6 = vector.broadcast %cst_5 : f32 to vector<16x128xf32>
    %7 = arith.maximumf %5, %6 : vector<16x128xf32>
    %c0_6 = arith.constant 0 : index
    %c0_7 = arith.constant 0 : index
    %8 = vector.load %arg6[%c0_6, %c0_7] : memref<16x128xf32, #tpu.memory_space<vmem>>, vector<16x128xf32>
    tpu.vector_store %arg6[%c0_6, %c0_7], %7 {strides = array<i32>} : memref<16x128xf32, #tpu.memory_space<vmem>>, vector<16x128xf32>,
    return
  }
  func.func @transform_0(%arg0: i32, %arg1: i32, %arg2: i32) -> (i32, i32) {
    %c0_i32 = arith.constant 0 : i32
    return %arg0, %arg2 : i32, i32
  }
  func.func @transform_1(%arg0: i32, %arg1: i32, %arg2: i32) -> (i32, i32) {
    %c0_i32 = arith.constant 0 : i32
    return %arg2, %arg1 : i32, i32
  }
  func.func @transform_2(%arg0: i32, %arg1: i32, %arg2: i32) -> (i32, i32) {
    %c0_i32 = arith.constant 0 : i32
    %c0_i32_0 = arith.constant 0 : i32
    return %c0_i32, %arg1 : i32, i32
  }
  func.func @transform_3(%arg0: i32, %arg1: i32, %arg2: i32) -> (i32, i32) {
    %c0_i32 = arith.constant 0 : i32
    return %arg0, %arg1 : i32, i32
  }
}

</mosaic_0001>

<llo_original>
// kernel: tpu_custom_call.1
$region0: #{tpu_custom_call.1}
  #allocation0 [shape = 'u32[]', space=smem, size = 0x4, offset = 0x4, fixed_abs, tag = 'smem constant byte address 0x4 - core index']
  #allocation1 [shape = 'u32[144,128]{1,0:T(1,128)}', space=vmem, size = 0x12000, scoped, tag = 'internal scratch']
  %s0 = inlined_call_operand.hbm [shape: bf16[16,128], index: 0, kind: input, shape index: {}]
  %s1 = inlined_call_operand.hbm [shape: bf16[128,128], index: 1, kind: input, shape index: {}]
  %s2 = inlined_call_operand.vmem [shape: f32[1,128], index: 2, kind: input, shape index: {}]
  %s3 = inlined_call_operand.hbm [shape: f32[16,128], index: 3, kind: output, shape index: {}]
  %s4 = sld [smem:[#allocation0]]
  $region30: #{tpu_custom_call.1} parent=0
    _
  %s6 = ssub.s32 1, %s4
  %s7 = scalar_select 0, %s6, %s4
  $region1: #{tpu_custom_call.1} parent=0
    #allocation2 [shape = 'u8[4096]{0}', space=vmem, size = 0x1000, scoped, tag = 'input window, operand 0, single buffered']
    #allocation3 [shape = 's32[1]{0}', space=sflag, size = 0x4, scoped, tag = 'scoped memory for tpu_custom_call.1']
    #allocation4 [shape = 's32[1]{0}', space=sflag, size = 0x4, scoped, tag = 'scoped memory for tpu_custom_call.1']
    #allocation5 [shape = 'u8[32768]{0}', space=vmem, size = 0x8000, scoped, tag = 'input window, operand 1, single buffered']
    #allocation6 [shape = 's32[1]{0}', space=sflag, size = 0x4, scoped, tag = 'scoped memory for tpu_custom_call.1']
    #allocation7 [shape = 'u8[8192]{0}', space=vmem, size = 0x2000, scoped, tag = 'output window, operand 0, single buffered']
    %8 = vsyncpa [#allocation3], 0
    %9 = vsyncpa [#allocation6], 0
    %10 = vsyncpa [#allocation4], 0
    // Predicated region
    $region2: #{tpu_custom_call.1} parent=1 // pred_check
      _
    $region3: #{tpu_custom_call.1} parent=1 // pred_check_branch
      %12 = sbr.rel (0) target = $region5
    $region4: #{tpu_custom_call.1} parent=1 // pred_region
      %s14 = ssub.s32 128, 128
      %15 = vsyncadd [#allocation3], %s14
      %s16 = sshll.u32 [#allocation2], 4
      %s17 = int_to_ptr.vmem [resolvable:$true] %s16
      %22 = dma.hbm_to_vmem [thread:$0]  %s0, 128, %s17, [#allocation3], 64, 64, 4
    $region5: #{tpu_custom_call.1} parent=1 // pred_fallthru
      _
    // Predicated region
    $region6: #{tpu_custom_call.1} parent=1 // pred_check
      _
    $region7: #{tpu_custom_call.1} parent=1 // pred_check_branch
      %24 = sbr.rel (0) target = $region9
    $region8: #{tpu_custom_call.1} parent=1 // pred_region
      %s26 = ssub.s32 1024, 1024
      %27 = vsyncadd [#allocation6], %s26
      %s28 = sshll.u32 [#allocation5], 4
      %s29 = int_to_ptr.vmem [resolvable:$true] %s28
      %34 = dma.hbm_to_vmem [thread:$0]  %s1, 1024, %s29, [#allocation6], 64, 64, 4
    $region9: #{tpu_custom_call.1} parent=1 // pred_fallthru
      _
    // Predicated region
    $region10: #{tpu_custom_call.1} parent=1 // pred_check
      _
    $region11: #{tpu_custom_call.1} parent=1 // pred_check_branch
      %36 = sbr.rel (0) target = $region13
    $region12: #{tpu_custom_call.1} parent=1 // pred_region
      _
    $region13: #{tpu_custom_call.1} parent=1 // pred_fallthru
      _
    // Predicated region
    $region14: #{tpu_custom_call.1} parent=1 // pred_check
      _
    $region15: #{tpu_custom_call.1} parent=1 // pred_check_branch
      %38 = sbr.rel (0) target = $region17
    $region16: #{tpu_custom_call.1} parent=1 // pred_region
      %39 = dma.done [#allocation3], 128
    $region17: #{tpu_custom_call.1} parent=1 // pred_fallthru
      _
    // Predicated region
    $region18: #{tpu_custom_call.1} parent=1 // pred_check
      _
    $region19: #{tpu_custom_call.1} parent=1 // pred_check_branch
      %41 = sbr.rel (0) target = $region21
    $region20: #{tpu_custom_call.1} parent=1 // pred_region
      %42 = dma.done [#allocation6], 1024
    $region21: #{tpu_custom_call.1} parent=1 // pred_fallthru
      _
    %v44 = vld [vmem:[#allocation2] sm:$0xf]
    %v45 = vld [vmem:[#allocation2 + $0x4] sm:$0xf]
    %v46 = vld [vmem:[#allocation5] sm:$0xf]
    %v47 = vld [vmem:[#allocation5 + $0x4] sm:$0xf]
    %v48 = vld [vmem:[#allocation5 + $0x8] sm:$0xf]
    %v49 = vld [vmem:[#allocation5 + $0xc] sm:$0xf]
    %v50 = vld [vmem:[#allocation5 + $0x10] sm:$0xf]
    %v51 = vld [vmem:[#allocation5 + $0x14] sm:$0xf]
    %v52 = vld [vmem:[#allocation5 + $0x18] sm:$0xf]
    %v53 = vld [vmem:[#allocation5 + $0x1c] sm:$0xf]
    %v54 = vld [vmem:[#allocation5 + $0x20] sm:$0xf]
    %v55 = vld [vmem:[#allocation5 + $0x24] sm:$0xf]
    %v56 = vld [vmem:[#allocation5 + $0x28] sm:$0xf]
    %v57 = vld [vmem:[#allocation5 + $0x2c] sm:$0xf]
    %v58 = vld [vmem:[#allocation5 + $0x30] sm:$0xf]
    %v59 = vld [vmem:[#allocation5 + $0x34] sm:$0xf]
    %v60 = vld [vmem:[#allocation5 + $0x38] sm:$0xf]
    %v61 = vld [vmem:[#allocation5 + $0x3c] sm:$0xf]
    %v62 = vld [vmem:[%s2] sm:$0x1]
    %v64 = vlaneseq
    %v65 = vshrl.u32 %v64, 7
    %v66 = vsub.s32 0, %v65
    %v67 = vrot.slane %v62, %v66
    %v71 = vunpack.c.l.b16 %v44
    %v72 = vunpack.c.l.b16 %v45
    %v73 = vpack.c.b16 %v72, %v71
    %v91 = vunpack.c.l.b16 %v46
    %v92 = vunpack.c.l.b16 %v47
    %v93 = vunpack.c.l.b16 %v48
    %v94 = vunpack.c.l.b16 %v49
    %v95 = vunpack.c.l.b16 %v50
    %v96 = vunpack.c.l.b16 %v51
    %v97 = vunpack.c.l.b16 %v52
    %v98 = vunpack.c.l.b16 %v53
    %v99 = vunpack.c.l.b16 %v54
    %v100 = vunpack.c.l.b16 %v55
    %v101 = vunpack.c.l.b16 %v56
    %v102 = vunpack.c.l.b16 %v57
    %v103 = vunpack.c.l.b16 %v58
    %v104 = vunpack.c.l.b16 %v59
    %v105 = vunpack.c.l.b16 %v60
    %v106 = vunpack.c.l.b16 %v61
    %v107 = vpack.c.b16 %v92, %v91
    %v108 = vpack.c.b16 %v94, %v93
    %v109 = vpack.c.b16 %v96, %v95
    %v110 = vpack.c.b16 %v98, %v97
    %v111 = vpack.c.b16 %v100, %v99
    %v112 = vpack.c.b16 %v102, %v101
    %v113 = vpack.c.b16 %v104, %v103
    %v114 = vpack.c.b16 %v106, %v105
    %123 = vmatprep.subr.bf16.mxu0 0
    %124 = vmatpush1.bf16.msra.mxu0 %v114
    %125 = vmatprep.subr.bf16.mxu0 0
    %126 = vmatpush1.bf16.msra.mxu0 %v113
    %127 = vmatprep.subr.bf16.mxu0 0
    %128 = vmatpush1.bf16.msra.mxu0 %v112
    %129 = vmatprep.subr.bf16.mxu0 0
    %130 = vmatpush1.bf16.msra.mxu0 %v111
    %131 = vmatprep.subr.bf16.mxu0 0
    %132 = vmatpush1.bf16.msra.mxu0 %v110
    %133 = vmatprep.subr.bf16.mxu0 0
    %134 = vmatpush1.bf16.msra.mxu0 %v109
    %135 = vmatprep.subr.bf16.mxu0 0
    %136 = vmatpush1.bf16.msra.mxu0 %v108
    %137 = vmatprep.subr.bf16.mxu0 0
    %138 = vmatpush1.bf16.msra.mxu0 %v107
    %139 = vmatprep.subr.bf16.mxu0 0
    %140 = vmatpush2.bf16.msra.mxu0 0
    %141 = vmatprep.subr.bf16.mxu0 0
    %142 = vmatpush2.bf16.msra.mxu0 0
    %143 = vmatprep.subr.bf16.mxu0 0
    %144 = vmatpush2.bf16.msra.mxu0 0
    %145 = vmatprep.subr.bf16.mxu0 0
    %146 = vmatpush2.bf16.msra.mxu0 0
    %147 = vmatprep.subr.bf16.mxu0 0
    %148 = vmatpush2.bf16.msra.mxu0 0
    %149 = vmatprep.subr.bf16.mxu0 0
    %150 = vmatpush2.bf16.msra.mxu0 0
    %151 = vmatprep.subr.bf16.mxu0 0
    %152 = vmatpush2.bf16.msra.mxu0 0
    %153 = vmatprep.subr.bf16.mxu0 0
    %154 = vmatpush2.bf16.msra.mxu0 0
    %155 = vmatprep.mubr.bf16.mxu0 0
    %156 = vmatmul.mubr.bf16.gmra.mxu0 %v73
    %v157 = vpop.f32.mrf.mxu0
    %v158 = vadd.f32 %v67, %v157
    %v159 = vpop.f32.mrf.mxu0
    %v160 = vpop.f32.mrf.mxu0
    %v161 = vadd.f32 %v67, %v160
    %v162 = vpop.f32.mrf.mxu0
    %163 = vdwg.mxu0
    %v164 = vmax.f32 %v158, 0.0
    %v165 = vmax.f32 %v161, 0.0
    %166 = vst [vmem:[#allocation7] sm:$0xff] %v164
    %167 = vst [vmem:[#allocation7 + $0x8] sm:$0xff] %v165
    // Predicated region
    $region22: #{tpu_custom_call.1} parent=1 // pred_check
      _
    $region23: #{tpu_custom_call.1} parent=1 // pred_check_branch
      %169 = sbr.rel (0) target = $region25
    $region24: #{tpu_custom_call.1} parent=1 // pred_region
      %s171 = ssub.s32 256, 256
      %172 = vsyncadd [#allocation4], %s171
      %s173 = sshll.u32 [#allocation7], 4
      %s174 = int_to_ptr.vmem [resolvable:$true] %s173
      %179 = dma.vmem_to_hbm [thread:$0]  %s174, 256, %s3, [#allocation4], 128, 128, 8
    $region25: #{tpu_custom_call.1} parent=1 // pred_fallthru
      _
    // Predicated region
    $region26: #{tpu_custom_call.1} parent=1 // pred_check
      _
    $region27: #{tpu_custom_call.1} parent=1 // pred_check_branch
      %181 = sbr.rel (0) target = $region29
    $region28: #{tpu_custom_call.1} parent=1 // pred_region
      %182 = dma.done [#allocation4], 256
    $region29: #{tpu_custom_call.1} parent=1 // pred_fallthru
      _
    %183 = vsyncpa [#allocation3], 1
    %184 = vsyncpa [#allocation6], 1
    %185 = vsyncpa [#allocation4], 1

</llo_original>
